<compile_context>
chip_gen: v6e
topology: v6e:2x2x1
jax: 0.10.0
libtpu: 0.0.40
codegen_flags: <defaults>
</compile_context>

<pallas_src>
import functools

import jax
import jax.numpy as jnp
from jax.experimental import pallas as pl
from jax.experimental.pallas import tpu as pltpu


def _focal_loss_kernel(logits_ref, targets_ref, alpha_t_ref, out_ref, acc_ref,
                       *, gamma, n_valid, block_n, blocks_per_core):
    core = pl.program_id(0)
    i = pl.program_id(1)

    @pl.when(i == 0)
    def _():
        acc_ref[...] = jnp.zeros_like(acc_ref)

    logits = logits_ref[...].astype(jnp.float32)     # (bn, C) cast in VMEM
    tgt = targets_ref[...]                           # (bn, 1) int32
    alpha_t = alpha_t_ref[...]                       # (bn, 1) f32 (pre-gathered alpha[target])
    bn, nclass = logits.shape

    # target-class logit via boolean mask + masked sum (no float onehot materialized)
    class_ids = jax.lax.broadcasted_iota(jnp.int32, (bn, nclass), 1)
    mask = class_ids == tgt
    logit_t = jnp.sum(jnp.where(mask, logits, 0.0), axis=-1, keepdims=True)

    # numerically stable logsumexp
    m = jnp.max(logits, axis=-1, keepdims=True)
    s = jnp.sum(jnp.exp(logits - m), axis=-1, keepdims=True)
    ce = (jnp.log(s) + m) - logit_t                  # (bn, 1), >= 0
    pt = jnp.exp(-ce)                                # (bn, 1) EUP op (essentially free)
    omp = jnp.maximum(1.0 - pt, 0.0)

    gi = int(gamma)
    if float(gamma) == float(gi) and 0 <= gi <= 16:  # integer gamma: VPU multiplies only
        if gi == 0:
            focal_w = jnp.ones_like(omp)
        else:
            focal_w = omp
            for _ in range(gi - 1):
                focal_w = focal_w * omp
    else:                                            # general pow, guarded against log(0)
        focal_w = jnp.where(omp > 0.0, omp ** gamma, 0.0)

    fl = alpha_t * focal_w * ce                      # (bn, 1)

    # mask rows beyond N (ragged last block / phantom blocks of the core split);
    # select is NaN/Inf-safe even if padded VMEM rows hold garbage
    logical_block = core * blocks_per_core + i
    row_ids = logical_block * block_n + jax.lax.broadcasted_iota(jnp.int32, (bn, 1), 0)
    fl = jnp.where(row_ids < n_valid, fl, 0.0)

    # scalar partial per step (XLU reduce), broadcast-added into a tiny (1,128) scratch
    acc_ref[...] = acc_ref[...] + jnp.sum(fl)

    @pl.when(i == pl.num_programs(1) - 1)
    def _():
        out_ref[...] = acc_ref[...]                  # lane-dense (1,128) per-core write


def _per_row_vmem_bytes(lane_c, itemsize):
    return (2 * lane_c * itemsize      # logits double buffer
            + 2 * 2 * 128 * 4          # targets + alpha_t double buffers (lane padded)
            + 6 * lane_c * 4)          # f32 temporaries (cast, iota, mask, exp, masked, misc)


def _choose_block_n(n, num_class, itemsize):
    lane_c = max(128, pl.cdiv(num_class, 128) * 128)
    budget = 18 * 1024 * 1024          # keep 2x est <= 40 MiB (v7x-safe)
    bn = budget // _per_row_vmem_bytes(lane_c, itemsize)
    bn = min(bn, 8192)
    bn = min(bn, pl.cdiv(n, 8) * 8)
    bn = max(8, (bn // 8) * 8)         # (8,128) sublane rule
    return int(bn)


def _default_num_cores():
    # v7x has 2 TensorCores per chip; v5e/v6e have 1 (avoid phantom-block waste there).
    try:
        kind = jax.devices()[0].device_kind.lower()
    except Exception:
        return 1
    return 2 if ("v7" in kind or "7x" in kind) else 1


def focal_loss(logits, targets, alpha, gamma=2.0, block_n=None, num_cores=None):
    """Mean-reduced focal loss. logits: (N, C) float (any dtype), targets: (N,) int,
    alpha: (C,) per-class weights."""
    n, num_class = logits.shape
    itemsize = jnp.dtype(logits.dtype).itemsize

    if num_cores is None:
        num_cores = _default_num_cores()
    if block_n is None:
        block_n = _choose_block_n(n, num_class, itemsize)

    total_blocks = pl.cdiv(n, block_n)
    num_cores = max(1, min(int(num_cores), int(total_blocks)))
    blocks_per_core = pl.cdiv(total_blocks, num_cores)
    last_block = total_blocks - 1

    targets_i32 = targets.astype(jnp.int32)
    targets2 = targets_i32.reshape(n, 1)
    alpha_t = alpha.astype(jnp.float32)[targets_i32].reshape(n, 1)   # gather once (4*N bytes)

    def row_block_map(core, i):
        # Clamp phantom blocks (from the core-split padding) onto a valid block;
        # their rows are masked out inside the kernel.
        return (jnp.minimum(core * blocks_per_core + i, last_block), 0)

    kernel = functools.partial(
        _focal_loss_kernel, gamma=float(gamma), n_valid=n,
        block_n=block_n, blocks_per_core=blocks_per_core)

    # VMEM estimate (same model as _choose_block_n) -> always set the scoped limit
    # with 2x margin; clamp to 40 MiB so it is also safe on v7x's 64 MiB VMEM.
    lane_c = max(128, pl.cdiv(num_class, 128) * 128)
    est_vmem = _per_row_vmem_bytes(lane_c, itemsize) * block_n + 8 * 128 * 4
    vmem_limit = int(min(40 * 1024 * 1024, max(2 * est_vmem, 32 * 1024 * 1024)))

    cost = pl.CostEstimate(
        flops=int(6 * n * num_class + 10 * n),
        transcendentals=int(n * num_class + 2 * n),   # exp(logits-m) + log(s) + exp(-ce)
        bytes_accessed=int(n * num_class * itemsize + 2 * n * 4 + num_cores * 128 * 4),
    )

    out = pl.pallas_call(
        kernel,
        out_shape=jax.ShapeDtypeStruct((1, num_cores * 128), jnp.float32),
        grid_spec=pltpu.PrefetchScalarGridSpec(
            num_scalar_prefetch=0,
            grid=(num_cores, blocks_per_core),
            in_specs=[
                pl.BlockSpec((block_n, num_class), row_block_map),   # logits tile
                pl.BlockSpec((block_n, 1), row_block_map),           # target ids
                pl.BlockSpec((block_n, 1), row_block_map),           # alpha[target]
            ],
            out_specs=pl.BlockSpec((1, 128), lambda core, i: (0, core)),  # per-core partial
            scratch_shapes=[pltpu.VMEM((1, 128), jnp.float32)],
        ),
        compiler_params=pltpu.CompilerParams(
            dimension_semantics=("parallel", "arbitrary"),
            vmem_limit_bytes=vmem_limit),
        cost_estimate=cost,
    )(logits, targets2, alpha_t)

    partials = out.reshape(num_cores, 128)[:, 0]
    return jnp.sum(partials) / jnp.float32(n)      # 'mean' reduction (size_average=True)


def focal_loss_ref(logits, targets, alpha, gamma=2.0):
    logits = logits.astype(jnp.float32)
    lse = jax.scipy.special.logsumexp(logits, axis=-1)
    ce = lse - logits[jnp.arange(logits.shape[0]), targets]
    pt = jnp.exp(-ce)
    a = alpha[targets]
    return jnp.mean(a * (1.0 - pt) ** gamma * ce)


if __name__ == "__main__":
    key = jax.random.PRNGKey(0)
    k1, k2, k3 = jax.random.split(key, 3)

    # Case 1: small (N, C) logits, default tiling / default core count.
    N, C = 16, 8
    logits = jax.random.normal(k1, (N, C), dtype=jnp.float32)
    targets = jax.random.randint(k2, (N,), 0, C, dtype=jnp.int32)
    alpha = jnp.linspace(0.5, 1.5, C, dtype=jnp.float32)   # per-class alpha of length C

    out = jax.block_until_ready(focal_loss(logits, targets, alpha, gamma=2.0))
    ref = focal_loss_ref(logits, targets, alpha, gamma=2.0)
    if not bool(jnp.allclose(out, ref, rtol=1e-5, atol=1e-6)):
        raise AssertionError(f"case1 mismatch: kernel={out} ref={ref}")

    # Case 2: N not a multiple of the row tile, forced 2-core split -> exercises the
    # ragged last block, the clamped phantom block, and both per-core partials.
    N2 = 24
    logits2 = jax.random.normal(k3, (N2, C), dtype=jnp.float32)
    targets2 = jax.random.randint(k2, (N2,), 0, C, dtype=jnp.int32)
    out2 = jax.block_until_ready(
        focal_loss(logits2, targets2, alpha, gamma=2.0, block_n=8, num_cores=2))
    ref2 = focal_loss_ref(logits2, targets2, alpha, gamma=2.0)
    if not bool(jnp.allclose(out2, ref2, rtol=1e-5, atol=1e-6)):
        raise AssertionError(f"case2 mismatch: kernel={out2} ref={ref2}")

    print("KERNEL_OK")
</pallas_src>

<mosaic_0001>
module attributes {stable_mosaic.version = 11 : i64} {
  func.func @_focal_loss_kernel(%arg0: i32, %arg1: i32, %arg2: memref<16x8xf32, #tpu.memory_space<vmem>>, %arg3: memref<16x1xi32, #tpu.memory_space<vmem>>, %arg4: memref<16x1xf32, #tpu.memory_space<vmem>>, %arg5: memref<1x128xf32, #tpu.memory_space<vmem>>, %arg6: memref<1x128xf32, #tpu.memory_space<vmem>>) attributes {dimension_semantics = [#tpu.dimension_semantics<parallel>, #tpu.dimension_semantics<arbitrary>], iteration_bounds = array<i64: 1, 1>, scalar_prefetch = 0 : i64, scratch_operands = 1 : i64, tpu.core_type = #tpu.core_type<tc>, window_params = [{transform_indices = @transform_0, window_bounds = array<i64: 16, 8>}, {transform_indices = @transform_1, window_bounds = array<i64: 16, 1>}, {transform_indices = @transform_2, window_bounds = array<i64: 16, 1>}, {transform_indices = @transform_3, window_bounds = array<i64: 1, 128>}]} {
    %c0_i32 = arith.constant 0 : i32
    %0 = arith.cmpi eq, %arg1, %c0_i32 : i32
    %1 = arith.extui %0 : i1 to i32
    %c0_i32_0 = arith.constant 0 : i32
    %2 = arith.cmpi ne, %1, %c0_i32_0 : i32
    scf.if %2 {
      %cst_21 = arith.constant 0.000000e+00 : f32
      %54 = vector.broadcast %cst_21 : f32 to vector<1x128xf32>
      %c0_22 = arith.constant 0 : index
      %c0_23 = arith.constant 0 : index
      %55 = vector.load %arg6[%c0_22, %c0_23] : memref<1x128xf32, #tpu.memory_space<vmem>>, vector<1x128xf32>
      tpu.vector_store %arg6[%c0_22, %c0_23], %54 {strides = array<i32>} : memref<1x128xf32, #tpu.memory_space<vmem>>, vector<1x128xf32>,
    } else {
    }
    %c0 = arith.constant 0 : index
    %c0_1 = arith.constant 0 : index
    %3 = vector.load %arg2[%c0, %c0_1] : memref<16x8xf32, #tpu.memory_space<vmem>>, vector<16x8xf32>
    %c0_2 = arith.constant 0 : index
    %c0_3 = arith.constant 0 : index
    %4 = vector.load %arg3[%c0_2, %c0_3] : memref<16x1xi32, #tpu.memory_space<vmem>>, vector<16x1xi32>
    %c0_4 = arith.constant 0 : index
    %c0_5 = arith.constant 0 : index
    %5 = vector.load %arg4[%c0_4, %c0_5] : memref<16x1xf32, #tpu.memory_space<vmem>>, vector<16x1xf32>
    %6 = tpu.iota {dimensions = array<i32: 1>} : vector<16x8xi32>
    %7 = vector.broadcast %4 : vector<16x1xi32> to vector<16x8xi32>
    %8 = arith.cmpi eq, %6, %7 : vector<16x8xi32>
    %cst = arith.constant 0.000000e+00 : f32
    %9 = vector.broadcast %cst : f32 to vector<16x8xf32>
    %10 = arith.select %8, %3, %9 : vector<16x8xi1>, vector<16x8xf32>
    %cst_6 = arith.constant dense<0.000000e+00> : vector<16xf32>
    %11 = vector.multi_reduction <add>, %10, %cst_6 [1] : vector<16x8xf32> to vector<16xf32>
    %12 = vector.shape_cast %11 : vector<16xf32> to vector<16x1xf32>
    %cst_7 = arith.constant dense<0xFF800000> : vector<16xf32>
    %13 = vector.multi_reduction <maximumf>, %3, %cst_7 [1] : vector<16x8xf32> to vector<16xf32>
    %14 = vector.shape_cast %13 : vector<16xf32> to vector<16x1xf32>
    %15 = vector.broadcast %14 : vector<16x1xf32> to vector<16x8xf32>
    %16 = arith.subf %3, %15 : vector<16x8xf32>
    %17 = math.exp %16 : vector<16x8xf32>
    %cst_8 = arith.constant dense<0.000000e+00> : vector<16xf32>
    %18 = vector.multi_reduction <add>, %17, %cst_8 [1] : vector<16x8xf32> to vector<16xf32>
    %19 = vector.shape_cast %18 : vector<16xf32> to vector<16x1xf32>
    %20 = math.log %19 : vector<16x1xf32>
    %21 = arith.addf %20, %14 : vector<16x1xf32>
    %22 = arith.subf %21, %12 : vector<16x1xf32>
    %cst_9 = arith.constant 0.000000e+00 : f32
    %23 = vector.broadcast %cst_9 : f32 to vector<16x1xf32>
    %24 = arith.subf %23, %22 : vector<16x1xf32>
    %25 = math.exp %24 : vector<16x1xf32>
    %cst_10 = arith.constant 1.000000e+00 : f32
    %26 = vector.broadcast %cst_10 : f32 to vector<16x1xf32>
    %27 = arith.subf %26, %25 : vector<16x1xf32>
    %cst_11 = arith.constant 0.000000e+00 : f32
    %28 = vector.broadcast %cst_11 : f32 to vector<16x1xf32>
    %29 = arith.maximumf %27, %28 : vector<16x1xf32>
    %30 = arith.mulf %29, %29 : vector<16x1xf32>
    %31 = arith.mulf %5, %30 : vector<16x1xf32>
    %32 = arith.mulf %31, %22 : vector<16x1xf32>
    %c1_i32 = arith.constant 1 : i32
    %33 = arith.muli %arg0, %c1_i32 : i32
    %34 = arith.addi %33, %arg1 : i32
    %c16_i32 = arith.constant 16 : i32
    %35 = arith.muli %34, %c16_i32 : i32
    %36 = tpu.iota {dimensions = array<i32: 0>} : vector<16x1xi32>
    %37 = vector.broadcast %35 : i32 to vector<16x1xi32>
    %38 = arith.addi %37, %36 : vector<16x1xi32>
    %c16_i32_12 = arith.constant 16 : i32
    %39 = vector.broadcast %c16_i32_12 : i32 to vector<16x1xi32>
    %40 = arith.cmpi slt, %38, %39 : vector<16x1xi32>
    %cst_13 = arith.constant 0.000000e+00 : f32
    %41 = vector.broadcast %cst_13 : f32 to vector<16x1xf32>
    %42 = arith.select %40, %32, %41 : vector<16x1xi1>, vector<16x1xf32>
    %c0_14 = arith.constant 0 : index
    %c0_15 = arith.constant 0 : index
    %43 = vector.load %arg6[%c0_14, %c0_15] : memref<1x128xf32, #tpu.memory_space<vmem>>, vector<1x128xf32>
    %44 = vector.shape_cast %42 : vector<16x1xf32> to vector<1x16x1xf32>
    %cst_16 = arith.constant dense<0.000000e+00> : vector<1xf32>
    %45 = vector.multi_reduction <add>, %44, %cst_16 [1, 2] : vector<1x16x1xf32> to vector<1xf32>
    %46 = vector.shape_cast %45 : vector<1xf32> to vector<1x1x1xf32>
    %47 = vector.extract %46[0, 0, 0] : f32 from vector<1x1x1xf32>
    %48 = vector.broadcast %47 : f32 to vector<1x128xf32>
    %49 = arith.addf %43, %48 : vector<1x128xf32>
    %c0_17 = arith.constant 0 : index
    %c0_18 = arith.constant 0 : index
    %50 = vector.load %arg6[%c0_17, %c0_18] : memref<1x128xf32, #tpu.memory_space<vmem>>, vector<1x128xf32>
    tpu.vector_store %arg6[%c0_17, %c0_18], %49 {strides = array<i32>} : memref<1x128xf32, #tpu.memory_space<vmem>>, vector<1x128xf32>,
    %c0_i32_19 = arith.constant 0 : i32
    %51 = arith.cmpi eq, %arg1, %c0_i32_19 : i32
    %52 = arith.extui %51 : i1 to i32
    %c0_i32_20 = arith.constant 0 : i32
    %53 = arith.cmpi ne, %52, %c0_i32_20 : i32
    scf.if %53 {
      %c0_21 = arith.constant 0 : index
      %c0_22 = arith.constant 0 : index
      %54 = vector.load %arg6[%c0_21, %c0_22] : memref<1x128xf32, #tpu.memory_space<vmem>>, vector<1x128xf32>
      %c0_23 = arith.constant 0 : index
      %c0_24 = arith.constant 0 : index
      %55 = vector.load %arg5[%c0_23, %c0_24] : memref<1x128xf32, #tpu.memory_space<vmem>>, vector<1x128xf32>
      tpu.vector_store %arg5[%c0_23, %c0_24], %54 {strides = array<i32>} : memref<1x128xf32, #tpu.memory_space<vmem>>, vector<1x128xf32>,
    } else {
    }
    return
  }
  func.func @transform_0(%arg0: i32, %arg1: i32) -> (i32, i32) {
    %c1_i32 = arith.constant 1 : i32
    %0 = arith.muli %arg0, %c1_i32 : i32
    %1 = arith.addi %0, %arg1 : i32
    %c0_i32 = arith.constant 0 : i32
    %2 = arith.minsi %1, %c0_i32 : i32
    %c0_i32_0 = arith.constant 0 : i32
    %c0_i32_1 = arith.constant 0 : i32
    return %2, %c0_i32_0 : i32, i32
  }
  func.func @transform_1(%arg0: i32, %arg1: i32) -> (i32, i32) {
    %c1_i32 = arith.constant 1 : i32
    %0 = arith.muli %arg0, %c1_i32 : i32
    %1 = arith.addi %0, %arg1 : i32
    %c0_i32 = arith.constant 0 : i32
    %2 = arith.minsi %1, %c0_i32 : i32
    %c0_i32_0 = arith.constant 0 : i32
    %c0_i32_1 = arith.constant 0 : i32
    return %2, %c0_i32_0 : i32, i32
  }
  func.func @transform_2(%arg0: i32, %arg1: i32) -> (i32, i32) {
    %c1_i32 = arith.constant 1 : i32
    %0 = arith.muli %arg0, %c1_i32 : i32
    %1 = arith.addi %0, %arg1 : i32
    %c0_i32 = arith.constant 0 : i32
    %2 = arith.minsi %1, %c0_i32 : i32
    %c0_i32_0 = arith.constant 0 : i32
    %c0_i32_1 = arith.constant 0 : i32
    return %2, %c0_i32_0 : i32, i32
  }
  func.func @transform_3(%arg0: i32, %arg1: i32) -> (i32, i32) {
    %c0_i32 = arith.constant 0 : i32
    %c0_i32_0 = arith.constant 0 : i32
    return %c0_i32, %arg0 : i32, i32
  }
}

</mosaic_0001>

<llo_original>
// kernel: tpu_custom_call.1
$region0: #{tpu_custom_call.1}
  #allocation0 [shape = 'u32[]', space=smem, size = 0x4, offset = 0x4, fixed_abs, tag = 'smem constant byte address 0x4 - core index']
  #allocation1 [shape = 'u32[144,128]{1,0:T(1,128)}', space=vmem, size = 0x12000, scoped, tag = 'internal scratch']
  #allocation2 [shape = 'f32[1,128]{1,0:T(1,128)}', space=vmem, size = 0x200, scoped, tag = 'scratch operand']
  %s0 = inlined_call_operand.vmem [shape: f32[16,8], index: 0, kind: input, shape index: {}]
  %s1 = inlined_call_operand.vmem [shape: s32[16,1], index: 1, kind: input, shape index: {}]
  %s2 = inlined_call_operand.vmem [shape: f32[16,1], index: 2, kind: input, shape index: {}]
  %s3 = inlined_call_operand.hbm [shape: f32[1,128], index: 3, kind: output, shape index: {}]
  %s4 = sld [smem:[#allocation0]]
  $region30: #{tpu_custom_call.1} parent=0
    _
  %s6 = ssub.s32 1, %s4
  %s7 = scalar_select 0, %s6, %s4
  $region1: #{tpu_custom_call.1} parent=0
    #allocation3 [shape = 'u8[512]{0}', space=vmem, size = 0x400, scoped, tag = 'output window, operand 0, single buffered']
    #allocation4 [shape = 's32[1]{0}', space=sflag, size = 0x4, scoped, tag = 'scoped memory for tpu_custom_call.1']
    %8 = vsyncpa [#allocation4], 0
    // Predicated region
    $region2: #{tpu_custom_call.1} parent=1 // pred_check
      _
    $region3: #{tpu_custom_call.1} parent=1 // pred_check_branch
      %10 = sbr.rel (0) target = $region5
    $region4: #{tpu_custom_call.1} parent=1 // pred_region
      %s11 = sadd.s32 0, 0
      %p12 = scmp.lt.s32.totalorder %s11, 0
      %s13 = scalar_select %p12, %s11, 0
      %s14 = smul.u32 2, %s13
      %p15 = scmp.lt.s32.totalorder %s14, 1
      %s16 = scalar_select %p15, %s14, 1
      %s17 = smul.addr %s16, 8
      %s18 = scalar_lea.vmem %s0, %s17
      %s19 = sadd.s32 0, 0
      %p20 = scmp.lt.s32.totalorder %s19, 0
      %s21 = scalar_select %p20, %s19, 0
      %s22 = smul.u32 2, %s21
    $region5: #{tpu_custom_call.1} parent=1 // pred_fallthru
      _
    // Predicated region
    $region6: #{tpu_custom_call.1} parent=1 // pred_check
      _
    $region7: #{tpu_custom_call.1} parent=1 // pred_check_branch
      %24 = sbr.rel (0) target = $region9
    $region8: #{tpu_custom_call.1} parent=1 // pred_region
      %s25 = sadd.s32 0, 0
      %p26 = scmp.lt.s32.totalorder %s25, 0
      %s27 = scalar_select %p26, %s25, 0
      %s28 = smul.u32 2, %s27
      %p29 = scmp.lt.s32.totalorder %s28, 1
      %s30 = scalar_select %p29, %s28, 1
      %s31 = smul.addr %s30, 8
      %s32 = scalar_lea.vmem %s1, %s31
      %s33 = sadd.s32 0, 0
      %p34 = scmp.lt.s32.totalorder %s33, 0
      %s35 = scalar_select %p34, %s33, 0
      %s36 = smul.u32 2, %s35
    $region9: #{tpu_custom_call.1} parent=1 // pred_fallthru
      _
    // Predicated region
    $region10: #{tpu_custom_call.1} parent=1 // pred_check
      _
    $region11: #{tpu_custom_call.1} parent=1 // pred_check_branch
      %38 = sbr.rel (0) target = $region13
    $region12: #{tpu_custom_call.1} parent=1 // pred_region
      %s39 = sadd.s32 0, 0
      %p40 = scmp.lt.s32.totalorder %s39, 0
      %s41 = scalar_select %p40, %s39, 0
      %s42 = smul.u32 2, %s41
      %p43 = scmp.lt.s32.totalorder %s42, 1
      %s44 = scalar_select %p43, %s42, 1
      %s45 = smul.addr %s44, 8
      %s46 = scalar_lea.vmem %s2, %s45
      %s47 = sadd.s32 0, 0
      %p48 = scmp.lt.s32.totalorder %s47, 0
      %s49 = scalar_select %p48, %s47, 0
      %s50 = smul.u32 2, %s49
    $region13: #{tpu_custom_call.1} parent=1 // pred_fallthru
      _
    %s51 = sadd.s32 0, 0
    %p52 = scmp.lt.s32.totalorder %s51, 0
    %s53 = scalar_select %p52, %s51, 0
    %s54 = smul.u32 2, %s53
    %p55 = scmp.lt.s32.totalorder %s54, 1
    %s56 = scalar_select %p55, %s54, 1
    %s57 = smul.addr %s56, 8
    %s58 = scalar_lea.vmem %s0, %s57
    %s59 = sadd.s32 0, 0
    %p60 = scmp.lt.s32.totalorder %s59, 0
    %s61 = scalar_select %p60, %s59, 0
    %s62 = smul.u32 2, %s61
    %p63 = scmp.lt.s32.totalorder %s62, 1
    %s64 = scalar_select %p63, %s62, 1
    %s65 = smul.addr %s64, 8
    %s66 = scalar_lea.vmem %s1, %s65
    %s67 = sadd.s32 0, 0
    %p68 = scmp.lt.s32.totalorder %s67, 0
    %s69 = scalar_select %p68, %s67, 0
    %s70 = smul.u32 2, %s69
    %p71 = scmp.lt.s32.totalorder %s70, 1
    %s72 = scalar_select %p71, %s70, 1
    %s73 = smul.addr %s72, 8
    %s74 = scalar_lea.vmem %s2, %s73
    %s75 = sadd.s32 0, 0
    %p76 = scmp.lt.s32.totalorder %s75, 0
    %s77 = scalar_select %p76, %s75, 0
    %s78 = smul.u32 2, %s77
    %p79 = scmp.lt.s32.totalorder %s78, 1
    %s80 = scalar_select %p79, %s78, 1
    %s81 = smul.addr %s80, 8
    %s82 = scalar_lea.vmem %s0, %s81
    %s83 = sadd.s32 0, 0
    %p84 = scmp.lt.s32.totalorder %s83, 0
    %s85 = scalar_select %p84, %s83, 0
    %s86 = smul.u32 2, %s85
    %s87 = sadd.s32 0, 0
    %p88 = scmp.lt.s32.totalorder %s87, 0
    %s89 = scalar_select %p88, %s87, 0
    %s90 = smul.u32 2, %s89
    %p91 = scmp.lt.s32.totalorder %s90, 1
    %s92 = scalar_select %p91, %s90, 1
    %s93 = smul.addr %s92, 8
    %s94 = scalar_lea.vmem %s1, %s93
    %s95 = sadd.s32 0, 0
    %p96 = scmp.lt.s32.totalorder %s95, 0
    %s97 = scalar_select %p96, %s95, 0
    %s98 = smul.u32 2, %s97
    %s99 = sadd.s32 0, 0
    %p100 = scmp.lt.s32.totalorder %s99, 0
    %s101 = scalar_select %p100, %s99, 0
    %s102 = smul.u32 2, %s101
    %p103 = scmp.lt.s32.totalorder %s102, 1
    %s104 = scalar_select %p103, %s102, 1
    %s105 = smul.addr %s104, 8
    %s106 = scalar_lea.vmem %s2, %s105
    %s107 = sadd.s32 0, 0
    %p108 = scmp.lt.s32.totalorder %s107, 0
    %s109 = scalar_select %p108, %s107, 0
    %s110 = smul.u32 2, %s109
    %p111 = scmp.eq.s32.totalorder 0, 0
    // Predicated region
    $region14: #{tpu_custom_call.1} parent=1 // pred_check
      %p112 = pneg %p111
    $region15: #{tpu_custom_call.1} parent=1 // pred_check_branch
      %114 = sbr.rel (%p112) target = $region17
    $region16: #{tpu_custom_call.1} parent=1 // pred_region
      %115 = vst [vmem:[#allocation2] sm:$0x1] 0.0
    $region17: #{tpu_custom_call.1} parent=1 // pred_fallthru
      _
    %v116 = vld [vmem:[%s82] sm:$0xff]
    %v117 = vld [vmem:[%s82 + $0x8] sm:$0xff]
    %v118 = vld [vmem:[%s94] sm:$0xff]
    %v119 = vld [vmem:[%s94 + $0x8] sm:$0xff]
    %v120 = vld [vmem:[%s106] sm:$0xff]
    %v121 = vld [vmem:[%s106 + $0x8] sm:$0xff]
    %v122 = vlaneseq
    %v123 = vand.u32 %v122, 127
    %124 = vset.pattern.permute.xlu0 0
    %125 = vperm.xlu0 %124, %v118
    %v126 = vpop.permute.xlu0 %125
    %127 = vset.pattern.permute.xlu0 0
    %128 = vperm.xlu0 %127, %v119
    %v129 = vpop.permute.xlu0 %128
    %vm130 = vcmp.eq.s32.totalorder %v123, %v126
    %vm131 = vcmp.eq.s32.totalorder %v123, %v129
    %v132 = vsel %vm130, %v116, 0.0
    %v133 = vsel %vm131, %v117, 0.0
    %vm134 = vcmask 64512
    %v135 = vsel %vm134, %v132, 0.0
    %136 = vadd.xlane.f32.xlu0 %v135
    %v137 = vpop.xlane.xlu0 %136
    %v138 = vsel %vm134, %v133, 0.0
    %139 = vadd.xlane.f32.xlu0 %v138
    %v140 = vpop.xlane.xlu0 %139
    %v141 = vsel %vm134, %v116, -inf
    %142 = vmax.xlane.f32.xlu0 %v141
    %v143 = vpop.xlane.xlu0 %142
    %v144 = vsel %vm134, %v117, -inf
    %145 = vmax.xlane.f32.xlu0 %v144
    %v146 = vpop.xlane.xlu0 %145
    %v147 = vsub.f32 %v116, %v143
    %v148 = vsub.f32 %v117, %v146
    %v149 = vmul.f32 %v147, 1.442695
    %v150 = vpow.pop %v149
    %v151 = vmul.f32 %v148, 1.442695
    %v152 = vpow.pop %v151
    %v153 = vsel %vm134, %v150, 0.0
    %154 = vadd.xlane.f32.xlu0 %v153
    %v155 = vpop.xlane.xlu0 %154
    %v156 = vsel %vm134, %v152, 0.0
    %157 = vadd.xlane.f32.xlu0 %v156
    %v158 = vpop.xlane.xlu0 %157
    %v159 = vlog2.pop %v155
    %v160 = vmul.f32 %v159, 0.6931472
    %v161 = vlog2.pop %v158
    %v162 = vmul.f32 %v161, 0.6931472
    %v163 = vadd.f32 %v160, %v143
    %v164 = vadd.f32 %v162, %v146
    %v165 = vsub.f32 %v163, %v137
    %v166 = vsub.f32 %v164, %v140
    %v167 = vsub.f32 0.0, %v165
    %v168 = vsub.f32 0.0, %v166
    %v169 = vmul.f32 %v167, 1.442695
    %v170 = vpow.pop %v169
    %v171 = vmul.f32 %v168, 1.442695
    %v172 = vpow.pop %v171
    %v173 = vsub.f32 1.0, %v170
    %v174 = vsub.f32 1.0, %v172
    %v175 = vmax.f32 %v173, 0.0
    %v176 = vmax.f32 %v174, 0.0
    %v177 = vmul.f32 %v175, %v175
    %v178 = vmul.f32 %v176, %v176
    %v179 = vmul.f32 %v120, %v177
    %v180 = vmul.f32 %v121, %v178
    %v181 = vmul.f32 %v179, %v165
    %v182 = vmul.f32 %v180, %v166
    %s183 = sadd.s32 0, 0
    %s184 = smul.u32 %s183, 16
    %v185 = vlaneseq
    %v186 = vshrl.u32 %v185, 7
    %v187 = vadd.s32 %v186, 8
    %v188 = vstv %s184
    %v189 = vadd.s32 %v188, %v186
    %v190 = vadd.s32 %v188, %v187
    %vm191 = vcmp.lt.s32.totalorder %v189, 16
    %vm192 = vcmp.lt.s32.totalorder %v190, 16
    %v193 = vsel %vm191, %v181, 0.0
    %v194 = vsel %vm192, %v182, 0.0
    %v195 = vld [vmem:[#allocation2] sm:$0x1]
    %vm196 = vcmask 7168
    %v197 = vsel %vm196, %v193, 0.0
    %v198 = vsel %vm196, %v194, 0.0
    %v199 = vadd.f32 %v197, %v198
    %200 = vadd.xlane.f32.xlu0 %v199
    %v201 = vpop.xlane.xlu0 %200
    %v202 = vrot.slane %v201, 4
    %v203 = vadd.f32 %v201, %v202
    %v204 = vrot.slane %v203, 2
    %v205 = vadd.f32 %v203, %v204
    %v206 = vrot.slane %v205, 1
    %v207 = vadd.f32 %v205, %v206
    %s208 = vtos %v207
    %v209 = vstv %s208
    %v210 = vadd.f32 %v195, %v209
    %211 = vst [vmem:[#allocation2] sm:$0x1] %v210
    // Predicated region
    $region18: #{tpu_custom_call.1} parent=1 // pred_check
      %p212 = pneg %p111
    $region19: #{tpu_custom_call.1} parent=1 // pred_check_branch
      %214 = sbr.rel (%p212) target = $region21
    $region20: #{tpu_custom_call.1} parent=1 // pred_region
      %v215 = vld [vmem:[#allocation2] sm:$0x1]
      %216 = vst [vmem:[#allocation3] sm:$0x1] %v215
    $region21: #{tpu_custom_call.1} parent=1 // pred_fallthru
      _
    // Predicated region
    $region22: #{tpu_custom_call.1} parent=1 // pred_check
      _
    $region23: #{tpu_custom_call.1} parent=1 // pred_check_branch
      %218 = sbr.rel (0) target = $region25
    $region24: #{tpu_custom_call.1} parent=1 // pred_region
      %s220 = ssub.s32 16, 16
      %221 = vsyncadd [#allocation4], %s220
      %s223 = sshll.u32 [#allocation3], 4
      %s224 = int_to_ptr.vmem [resolvable:$true] %s223
      %226 = dma.vmem_to_hbm [thread:$0]  %s224, 16, %s3, [#allocation4]
    $region25: #{tpu_custom_call.1} parent=1 // pred_fallthru
      _
    // Predicated region
    $region26: #{tpu_custom_call.1} parent=1 // pred_check
      _
    $region27: #{tpu_custom_call.1} parent=1 // pred_check_branch
      %228 = sbr.rel (0) target = $region29
    $region28: #{tpu_custom_call.1} parent=1 // pred_region
      %229 = dma.done [#allocation4], 16
    $region29: #{tpu_custom_call.1} parent=1 // pred_fallthru
      _
    %230 = vsyncpa [#allocation4], 1

</llo_original>
